<compile_context>
chip_gen: v7x
topology: tpu7x:2x2x1
jax: 0.10.0
libtpu: 0.0.40
codegen_flags: <defaults>
</compile_context>

<pallas_src>
import jax
import jax.numpy as jnp
import numpy as np
from jax.experimental import pallas as pl
from jax.experimental.pallas import tpu as pltpu


def gru_kernel(i_ref, h_ref, g_ref, w_ref, b_ref, out_ref):
    N, Di = i_ref.shape           # Di = gene_emb + gene_hid
    Dh = h_ref.shape[1]           # gene_hid
    Dg = g_ref.shape[1]           # g_hid
    inv_n = 1.0 / N               # compile-time constant

    i_x = i_ref[...]              # (N, Di)
    h = h_ref[...]                # (N, Dh)
    g_row = g_ref[...]            # (1, Dg)

    # ----- gene GRUCell -------------------------------------------------------
    # Fused gate matmul against rows [0 : Di+Dg+Dh] of the packed slab,
    # column blocks [r | z | c | u].  Row blocks: [0:Di]=i, [Di:Di+Dg]=g
    # (broadcast row), [Di+Dg:]=h.  Zero-padded blocks keep c/u exact.
    gates1 = (jnp.dot(i_x, w_ref[0:Di, :], preferred_element_type=jnp.float32)
              + jnp.dot(h, w_ref[Di + Dg:Di + Dg + Dh, :],
                        preferred_element_type=jnp.float32)
              + jnp.dot(g_row, w_ref[Di:Di + Dg, :],
                        preferred_element_type=jnp.float32)   # (1, 4*Dh) broadcast
              + b_ref[0:1, :])                                 # -> (N, 4*Dh)

    r1 = jax.nn.sigmoid(gates1[:, 0:Dh])
    z1 = jax.nn.sigmoid(gates1[:, Dh:2 * Dh])
    c1 = gates1[:, 2 * Dh:3 * Dh]
    u1_lin = gates1[:, 3 * Dh:4 * Dh]
    u1 = jnp.tanh(c1 + r1 * u1_lin)
    new_h = z1 * h + (1.0 - z1) * u1                           # (N, Dh)

    # mean over genes -> input to the global GRU cell
    mean = jnp.sum(new_h, axis=0, keepdims=True) * inv_n       # (1, Dh)

    # ----- g GRUCell ----------------------------------------------------------
    # Rows [off : off+Dh+Dg] of the slab, column blocks [r | z | c | u];
    # row blocks: [0:Dh] = mean, [Dh:] = g.
    off = Di + Dg + Dh
    gates2 = (jnp.dot(mean, w_ref[off:off + Dh, :],
                      preferred_element_type=jnp.float32)
              + jnp.dot(g_row, w_ref[off + Dh:off + Dh + Dg, :],
                        preferred_element_type=jnp.float32)
              + b_ref[1:2, :])                                 # (1, 4*Dg)

    r2 = jax.nn.sigmoid(gates2[:, 0:Dg])
    z2 = jax.nn.sigmoid(gates2[:, Dg:2 * Dg])
    c2 = gates2[:, 2 * Dg:3 * Dg]
    u2_lin = gates2[:, 3 * Dg:4 * Dg]
    u2 = jnp.tanh(c2 + r2 * u2_lin)
    new_g = z2 * g_row + (1.0 - z2) * u2                       # (1, Dg)

    # ----- single combined output slab: rows 0..N-1 = new_h, row N = new_g -----
    out_ref[0:N, :] = new_h
    out_ref[N:N + 1, :] = new_g


def gru_forward(i, h, g, mask, packed):
    """mask is unused by the reference PyTorch forward; kept for API parity."""
    del mask
    N = i.shape[0]
    Dh = h.shape[1]
    Dg = g.shape[0]
    # Combined-output layout relies on matching gate widths (true for this config).
    assert Dh == Dg, "combined output slab requires gene_hid == g_hid"
    g2 = g.reshape(1, Dg)

    vmem = pl.BlockSpec(memory_space=pltpu.MemorySpace.VMEM)
    out = pl.pallas_call(
        gru_kernel,
        out_shape=jax.ShapeDtypeStruct((N + 1, Dh), jnp.float32),
        in_specs=[vmem] * 5,
        out_specs=vmem,
    )(i, h, g2, packed['w'], packed['b'])

    return out[:N], out[N]


def make_params(key, gene_emb, gene_hid, g_hid):
    """Deterministic init mirroring the nn.Linear shapes (stored as [in, out])."""
    x1 = gene_emb + gene_hid + g_hid   # gene GRUCell x_dim
    h1 = gene_hid                      # gene GRUCell h_dim
    x2 = gene_hid                      # g GRUCell x_dim
    h2 = g_hid                         # g GRUCell h_dim

    def linear(key, fan_in, fan_out):
        kw, kb = jax.random.split(key)
        bound = 1.0 / np.sqrt(fan_in)
        w = jax.random.uniform(kw, (fan_in, fan_out), jnp.float32, -bound, bound)
        b = jax.random.uniform(kb, (1, fan_out), jnp.float32, -bound, bound)
        return w, b

    keys = jax.random.split(key, 8)
    p = {}
    p['wr1'], p['br1'] = linear(keys[0], x1 + h1, h1)
    p['wz1'], p['bz1'] = linear(keys[1], x1 + h1, h1)
    p['wc1'], p['bc1'] = linear(keys[2], x1, h1)
    p['wu1'], p['bu1'] = linear(keys[3], h1, h1)
    p['wr2'], p['br2'] = linear(keys[4], x2 + h2, h2)
    p['wz2'], p['bz2'] = linear(keys[5], x2 + h2, h2)
    p['wc2'], p['bc2'] = linear(keys[6], x2, h2)
    p['wu2'], p['bu2'] = linear(keys[7], h2, h2)
    return p


def pack_params(p, gene_emb, gene_hid, g_hid):
    """One-time host-side packing of all gate weights/biases into fused slabs.

    Weight slab W: ((Di+Dg+Dh) + (Dh+Dg), 4*Dh) with column blocks [r | z | c | u].
      gene cell rows [0:Di]=i, [Di:Di+Dg]=g (zeroed for u), [Di+Dg:Di+Dg+Dh]=h
        (zeroed for c).
      g cell rows    [off:off+Dh]=mean (zeroed for u), [off+Dh:off+Dh+Dg]=g
        (zeroed for c), where off = Di+Dg+Dh.
    Bias slab B: (2, 4*Dh); row 0 = gene cell, row 1 = g cell.
    """
    Di = gene_emb + gene_hid
    Dh = gene_hid
    Dg = g_hid
    assert Dh == Dg

    rows1 = Di + Dg + Dh            # 112
    rows2 = Dh + Dg                 # 64
    W = jnp.zeros((rows1 + rows2, 4 * Dh), jnp.float32)

    # gene cell (rows 0 : rows1)
    W = W.at[0:rows1, 0:Dh].set(p['wr1'])                        # r: [i|g|h]
    W = W.at[0:rows1, Dh:2 * Dh].set(p['wz1'])                   # z: [i|g|h]
    W = W.at[0:Di + Dg, 2 * Dh:3 * Dh].set(p['wc1'])             # c: [i|g], h rows 0
    W = W.at[Di + Dg:rows1, 3 * Dh:4 * Dh].set(p['wu1'])         # u: h only

    # g cell (rows rows1 : rows1+rows2)
    o = rows1
    W = W.at[o:o + rows2, 0:Dg].set(p['wr2'])                    # r: [mean|g]
    W = W.at[o:o + rows2, Dg:2 * Dg].set(p['wz2'])               # z: [mean|g]
    W = W.at[o:o + Dh, 2 * Dg:3 * Dg].set(p['wc2'])              # c: mean only
    W = W.at[o + Dh:o + rows2, 3 * Dg:4 * Dg].set(p['wu2'])      # u: g only

    B = jnp.concatenate(
        [jnp.concatenate([p['br1'], p['bz1'], p['bc1'], p['bu1']], axis=1),
         jnp.concatenate([p['br2'], p['bz2'], p['bc2'], p['bu2']], axis=1)],
        axis=0)                                                  # (2, 4*Dh)

    return {'w': W, 'b': B}


def ref_forward(i, h, g, mask, p):
    """Pure-JAX reference matching the PyTorch semantics (unpacked params)."""
    del mask
    N = h.shape[0]
    g_exp = jnp.broadcast_to(g[None, :], (N, g.shape[0]))
    x = jnp.concatenate([i, g_exp], axis=-1)

    def cell(x, hh, wr, br, wz, bz, wc, bc, wu, bu):
        rz = jnp.concatenate([x, hh], axis=-1)
        r = jax.nn.sigmoid(rz @ wr + br[0])
        z = jax.nn.sigmoid(rz @ wz + bz[0])
        u = jnp.tanh(x @ wc + bc[0] + r * (hh @ wu + bu[0]))
        return z * hh + (1.0 - z) * u

    new_h = cell(x, h, p['wr1'], p['br1'], p['wz1'], p['bz1'],
                 p['wc1'], p['bc1'], p['wu1'], p['bu1'])
    mean = jnp.sum(new_h, axis=0) / N
    new_g = cell(mean, g, p['wr2'], p['br2'], p['wz2'], p['bz2'],
                 p['wc2'], p['bc2'], p['wu2'], p['bu2'])
    return new_h, new_g


if __name__ == "__main__":
    gene_emb, gene_hid, g_hid, N = 16, 32, 32, 8
    edge_dim = 50  # unused by the forward pass (kept for constructor parity)

    key = jax.random.PRNGKey(0)
    k_i, k_h, k_g, k_p = jax.random.split(key, 4)

    i = jax.random.normal(k_i, (N, gene_emb + gene_hid), jnp.float32)
    h = jax.random.normal(k_h, (N, gene_hid), jnp.float32)
    g = jax.random.normal(k_g, (g_hid,), jnp.float32)
    mask = jnp.ones((N, N), jnp.float32)

    params = make_params(k_p, gene_emb, gene_hid, g_hid)
    packed = pack_params(params, gene_emb, gene_hid, g_hid)   # once, outside hot path
    packed = jax.tree_util.tree_map(jax.block_until_ready, packed)

    gru_forward_jit = jax.jit(gru_forward)
    new_h, new_g = gru_forward_jit(i, h, g, mask, packed)
    jax.block_until_ready((new_h, new_g))

    ref_h, ref_g = ref_forward(i, h, g, mask, params)
    assert new_h.shape == (N, gene_hid) and new_g.shape == (g_hid,)
    np.testing.assert_allclose(np.asarray(new_h), np.asarray(ref_h), rtol=1e-5, atol=1e-5)
    np.testing.assert_allclose(np.asarray(new_g), np.asarray(ref_g), rtol=1e-5, atol=1e-5)

    print("KERNEL_OK")
</pallas_src>

<mosaic_0001>
module attributes {stable_mosaic.version = 11 : i64} {
  func.func @gru_kernel(%arg0: memref<8x48xf32, #tpu.memory_space<vmem>>, %arg1: memref<8x32xf32, #tpu.memory_space<vmem>>, %arg2: memref<1x32xf32, #tpu.memory_space<vmem>>, %arg3: memref<176x128xf32, #tpu.memory_space<vmem>>, %arg4: memref<2x128xf32, #tpu.memory_space<vmem>>, %arg5: memref<9x32xf32, #tpu.memory_space<vmem>>) attributes {dimension_semantics = [], scalar_prefetch = 0 : i64, scratch_operands = 0 : i64, tpu.core_type = #tpu.core_type<tc>} {
    %c0 = arith.constant 0 : index
    %c0_0 = arith.constant 0 : index
    %0 = vector.load %arg0[%c0, %c0_0] : memref<8x48xf32, #tpu.memory_space<vmem>>, vector<8x48xf32>
    %c0_1 = arith.constant 0 : index
    %c0_2 = arith.constant 0 : index
    %1 = vector.load %arg1[%c0_1, %c0_2] : memref<8x32xf32, #tpu.memory_space<vmem>>, vector<8x32xf32>
    %c0_3 = arith.constant 0 : index
    %c0_4 = arith.constant 0 : index
    %2 = vector.load %arg2[%c0_3, %c0_4] : memref<1x32xf32, #tpu.memory_space<vmem>>, vector<1x32xf32>
    %c0_5 = arith.constant 0 : index
    %c0_6 = arith.constant 0 : index
    %3 = vector.load %arg3[%c0_5, %c0_6] : memref<176x128xf32, #tpu.memory_space<vmem>>, vector<48x128xf32>
    %cst = arith.constant dense<0.000000e+00> : vector<8x128xf32>
    %4 = tpu.matmul %0, %3, %cst {dimension_numbers = #tpu.dot_dimension_numbers<[1], [0], [0], [1], [0, 0, 1, 1], [], []>} : vector<8x48xf32>, vector<48x128xf32>, vector<8x128xf32> -> vector<8x128xf32>
    %c80 = arith.constant 80 : index
    %c0_7 = arith.constant 0 : index
    %5 = vector.load %arg3[%c80, %c0_7] : memref<176x128xf32, #tpu.memory_space<vmem>>, vector<32x128xf32>
    %cst_8 = arith.constant dense<0.000000e+00> : vector<8x128xf32>
    %6 = tpu.matmul %1, %5, %cst_8 {dimension_numbers = #tpu.dot_dimension_numbers<[1], [0], [0], [1], [0, 0, 1, 1], [], []>} : vector<8x32xf32>, vector<32x128xf32>, vector<8x128xf32> -> vector<8x128xf32>
    %7 = arith.addf %4, %6 : vector<8x128xf32>
    %c48 = arith.constant 48 : index
    %c0_9 = arith.constant 0 : index
    %8 = vector.load %arg3[%c48, %c0_9] : memref<176x128xf32, #tpu.memory_space<vmem>>, vector<32x128xf32>
    %cst_10 = arith.constant dense<0.000000e+00> : vector<1x128xf32>
    %9 = tpu.matmul %2, %8, %cst_10 {dimension_numbers = #tpu.dot_dimension_numbers<[1], [0], [0], [1], [0, 0, 1, 1], [], []>} : vector<1x32xf32>, vector<32x128xf32>, vector<1x128xf32> -> vector<1x128xf32>
    %10 = vector.broadcast %9 : vector<1x128xf32> to vector<8x128xf32>
    %11 = arith.addf %7, %10 : vector<8x128xf32>
    %c0_11 = arith.constant 0 : index
    %c0_12 = arith.constant 0 : index
    %12 = vector.load %arg4[%c0_11, %c0_12] : memref<2x128xf32, #tpu.memory_space<vmem>>, vector<1x128xf32>
    %13 = vector.broadcast %12 : vector<1x128xf32> to vector<8x128xf32>
    %14 = arith.addf %11, %13 : vector<8x128xf32>
    %15 = vector.extract_strided_slice %14 {offsets = [0, 0], sizes = [8, 32], strides = [1, 1]} : vector<8x128xf32> to vector<8x32xf32>
    %16 = arith.negf %15 : vector<8x32xf32>
    %17 = math.exp %16 : vector<8x32xf32>
    %cst_13 = arith.constant 1.000000e+00 : f32
    %18 = vector.broadcast %cst_13 : f32 to vector<8x32xf32>
    %19 = arith.addf %18, %17 : vector<8x32xf32>
    %20 = arith.divf %18, %19 : vector<8x32xf32>
    %21 = vector.extract_strided_slice %14 {offsets = [0, 32], sizes = [8, 32], strides = [1, 1]} : vector<8x128xf32> to vector<8x32xf32>
    %22 = arith.negf %21 : vector<8x32xf32>
    %23 = math.exp %22 : vector<8x32xf32>
    %cst_14 = arith.constant 1.000000e+00 : f32
    %24 = vector.broadcast %cst_14 : f32 to vector<8x32xf32>
    %25 = arith.addf %24, %23 : vector<8x32xf32>
    %26 = arith.divf %24, %25 : vector<8x32xf32>
    %27 = vector.extract_strided_slice %14 {offsets = [0, 64], sizes = [8, 32], strides = [1, 1]} : vector<8x128xf32> to vector<8x32xf32>
    %28 = vector.extract_strided_slice %14 {offsets = [0, 96], sizes = [8, 32], strides = [1, 1]} : vector<8x128xf32> to vector<8x32xf32>
    %29 = arith.mulf %20, %28 : vector<8x32xf32>
    %30 = arith.addf %27, %29 : vector<8x32xf32>
    %31 = math.tanh %30 : vector<8x32xf32>
    %32 = arith.mulf %26, %1 : vector<8x32xf32>
    %cst_15 = arith.constant 1.000000e+00 : f32
    %33 = vector.broadcast %cst_15 : f32 to vector<8x32xf32>
    %34 = arith.subf %33, %26 : vector<8x32xf32>
    %35 = arith.mulf %34, %31 : vector<8x32xf32>
    %36 = arith.addf %32, %35 : vector<8x32xf32>
    %cst_16 = arith.constant dense<0.000000e+00> : vector<32xf32>
    %37 = vector.multi_reduction <add>, %36, %cst_16 [0] : vector<8x32xf32> to vector<32xf32>
    %38 = vector.shape_cast %37 : vector<32xf32> to vector<1x32xf32>
    %cst_17 = arith.constant 1.250000e-01 : f32
    %39 = vector.broadcast %cst_17 : f32 to vector<1x32xf32>
    %40 = arith.mulf %38, %39 : vector<1x32xf32>
    %c112 = arith.constant 112 : index
    %c0_18 = arith.constant 0 : index
    %41 = vector.load %arg3[%c112, %c0_18] : memref<176x128xf32, #tpu.memory_space<vmem>>, vector<32x128xf32>
    %cst_19 = arith.constant dense<0.000000e+00> : vector<1x128xf32>
    %42 = tpu.matmul %40, %41, %cst_19 {dimension_numbers = #tpu.dot_dimension_numbers<[1], [0], [0], [1], [0, 0, 1, 1], [], []>} : vector<1x32xf32>, vector<32x128xf32>, vector<1x128xf32> -> vector<1x128xf32>
    %c144 = arith.constant 144 : index
    %c0_20 = arith.constant 0 : index
    %43 = vector.load %arg3[%c144, %c0_20] : memref<176x128xf32, #tpu.memory_space<vmem>>, vector<32x128xf32>
    %cst_21 = arith.constant dense<0.000000e+00> : vector<1x128xf32>
    %44 = tpu.matmul %2, %43, %cst_21 {dimension_numbers = #tpu.dot_dimension_numbers<[1], [0], [0], [1], [0, 0, 1, 1], [], []>} : vector<1x32xf32>, vector<32x128xf32>, vector<1x128xf32> -> vector<1x128xf32>
    %45 = arith.addf %42, %44 : vector<1x128xf32>
    %c1 = arith.constant 1 : index
    %c0_22 = arith.constant 0 : index
    %46 = vector.load %arg4[%c1, %c0_22] : memref<2x128xf32, #tpu.memory_space<vmem>>, vector<1x128xf32>
    %47 = arith.addf %45, %46 : vector<1x128xf32>
    %48 = vector.extract_strided_slice %47 {offsets = [0, 0], sizes = [1, 32], strides = [1, 1]} : vector<1x128xf32> to vector<1x32xf32>
    %49 = arith.negf %48 : vector<1x32xf32>
    %50 = math.exp %49 : vector<1x32xf32>
    %cst_23 = arith.constant 1.000000e+00 : f32
    %51 = vector.broadcast %cst_23 : f32 to vector<1x32xf32>
    %52 = arith.addf %51, %50 : vector<1x32xf32>
    %53 = arith.divf %51, %52 : vector<1x32xf32>
    %54 = vector.extract_strided_slice %47 {offsets = [0, 32], sizes = [1, 32], strides = [1, 1]} : vector<1x128xf32> to vector<1x32xf32>
    %55 = arith.negf %54 : vector<1x32xf32>
    %56 = math.exp %55 : vector<1x32xf32>
    %cst_24 = arith.constant 1.000000e+00 : f32
    %57 = vector.broadcast %cst_24 : f32 to vector<1x32xf32>
    %58 = arith.addf %57, %56 : vector<1x32xf32>
    %59 = arith.divf %57, %58 : vector<1x32xf32>
    %60 = vector.extract_strided_slice %47 {offsets = [0, 64], sizes = [1, 32], strides = [1, 1]} : vector<1x128xf32> to vector<1x32xf32>
    %61 = vector.extract_strided_slice %47 {offsets = [0, 96], sizes = [1, 32], strides = [1, 1]} : vector<1x128xf32> to vector<1x32xf32>
    %62 = arith.mulf %53, %61 : vector<1x32xf32>
    %63 = arith.addf %60, %62 : vector<1x32xf32>
    %64 = math.tanh %63 : vector<1x32xf32>
    %65 = arith.mulf %59, %2 : vector<1x32xf32>
    %cst_25 = arith.constant 1.000000e+00 : f32
    %66 = vector.broadcast %cst_25 : f32 to vector<1x32xf32>
    %67 = arith.subf %66, %59 : vector<1x32xf32>
    %68 = arith.mulf %67, %64 : vector<1x32xf32>
    %69 = arith.addf %65, %68 : vector<1x32xf32>
    %c0_26 = arith.constant 0 : index
    %c0_27 = arith.constant 0 : index
    %70 = vector.load %arg5[%c0_26, %c0_27] : memref<9x32xf32, #tpu.memory_space<vmem>>, vector<8x32xf32>
    tpu.vector_store %arg5[%c0_26, %c0_27], %36 {strides = array<i32>} : memref<9x32xf32, #tpu.memory_space<vmem>>, vector<8x32xf32>,
    %c8 = arith.constant 8 : index
    %c0_28 = arith.constant 0 : index
    %71 = vector.load %arg5[%c8, %c0_28] : memref<9x32xf32, #tpu.memory_space<vmem>>, vector<1x32xf32>
    tpu.vector_store %arg5[%c8, %c0_28], %69 {strides = array<i32>} : memref<9x32xf32, #tpu.memory_space<vmem>>, vector<1x32xf32>,
    return
  }
}

</mosaic_0001>

<llo_original>
// kernel: gru_forward.1
$region0: #{gru_forward.1}
  #allocation0 [shape = 'u32[]', space=smem, size = 0x4, offset = 0x4, fixed_abs, tag = 'smem constant byte address 0x4 - core index']
  #allocation1 [shape = 'u32[144,128]{1,0:T(1,128)}', space=vmem, size = 0x12000, scoped, tag = 'internal scratch']
  %s0 = inlined_call_operand.hbm [shape: f32[8,48], index: 0, kind: input, shape index: {}]
  %s1 = inlined_call_operand.hbm [shape: f32[8,32], index: 1, kind: input, shape index: {}]
  %s2 = inlined_call_operand.vmem [shape: f32[1,32], index: 2, kind: input, shape index: {}]
  %s3 = inlined_call_operand.hbm [shape: f32[176,128], index: 3, kind: input, shape index: {}]
  %s4 = inlined_call_operand.vmem [shape: f32[2,128], index: 4, kind: input, shape index: {}]
  %s5 = inlined_call_operand.vmem [shape: f32[9,32], index: 5, kind: output, shape index: {}]
  %s6 = sld [smem:[#allocation0]]
  $region42: #{gru_forward.1} parent=0
    _
  %s8 = ssub.s32 1, %s6
  %s9 = scalar_select 0, %s8, %s6
  $region1: #{gru_forward.1} parent=0
    #allocation2 [shape = 'u8[4096]{0}', space=vmem, size = 0x1000, scoped, tag = 'input window, operand 0, single buffered']
    #allocation3 [shape = 's32[1]{0}', space=sflag, size = 0x4, scoped, tag = 'scoped memory for gru_forward.1']
    #allocation4 [shape = 'u8[4096]{0}', space=vmem, size = 0x1000, scoped, tag = 'input window, operand 1, single buffered']
    #allocation5 [shape = 's32[1]{0}', space=sflag, size = 0x4, scoped, tag = 'scoped memory for gru_forward.1']
    #allocation6 [shape = 'u8[90112]{0}', space=vmem, size = 0x16000, scoped, tag = 'input window, operand 3, single buffered']
    %10 = vsyncpa [#allocation3], 0
    %11 = vsyncpa [#allocation5], 0
    // Predicated region
    $region2: #{gru_forward.1} parent=1 // pred_check
      _
    $region3: #{gru_forward.1} parent=1 // pred_check_branch
      %13 = sbr.rel (0) target = $region5
    $region4: #{gru_forward.1} parent=1 // pred_region
      %s15 = ssub.s32 128, 128
      %16 = vsyncadd [#allocation3], %s15
      %s18 = sshll.u32 [#allocation2], 4
      %s19 = int_to_ptr.vmem [resolvable:$true] %s18
      %21 = dma.hbm_to_vmem [thread:$0]  %s0, 128, %s19, [#allocation3]
    $region5: #{gru_forward.1} parent=1 // pred_fallthru
      _
    // Predicated region
    $region6: #{gru_forward.1} parent=1 // pred_check
      _
    $region7: #{gru_forward.1} parent=1 // pred_check_branch
      %23 = sbr.rel (0) target = $region9
    $region8: #{gru_forward.1} parent=1 // pred_region
      %s25 = ssub.s32 128, 128
      %26 = vsyncadd [#allocation5], %s25
      %s28 = sshll.u32 [#allocation4], 4
      %s29 = int_to_ptr.vmem [resolvable:$true] %s28
      %31 = dma.hbm_to_vmem [thread:$0]  %s1, 128, %s29, [#allocation5]
    $region9: #{gru_forward.1} parent=1 // pred_fallthru
      _
    // Predicated region
    $region10: #{gru_forward.1} parent=1 // pred_check
      _
    $region11: #{gru_forward.1} parent=1 // pred_check_branch
      %33 = sbr.rel (0) target = $region13
    $region12: #{gru_forward.1} parent=1 // pred_region
      _
    $region13: #{gru_forward.1} parent=1 // pred_fallthru
      _
    // Predicated region
    $region14: #{gru_forward.1} parent=1 // pred_check
      _
    $region15: #{gru_forward.1} parent=1 // pred_check_branch
      %35 = sbr.rel (0) target = $region17
    $region16: #{gru_forward.1} parent=1 // pred_region
      %s37 = ssub.s32 2816, 2816
      %38 = vsyncadd [#allocation5], %s37
      %s39 = sshll.u32 [#allocation6], 4
      %s40 = int_to_ptr.vmem [resolvable:$true] %s39
      %45 = dma.hbm_to_vmem [thread:$0]  %s3, 2816, %s40, [#allocation5], 128, 128, 8
    $region17: #{gru_forward.1} parent=1 // pred_fallthru
      _
    // Predicated region
    $region18: #{gru_forward.1} parent=1 // pred_check
      _
    $region19: #{gru_forward.1} parent=1 // pred_check_branch
      %47 = sbr.rel (0) target = $region21
    $region20: #{gru_forward.1} parent=1 // pred_region
      _
    $region21: #{gru_forward.1} parent=1 // pred_fallthru
      _
    // Predicated region
    $region22: #{gru_forward.1} parent=1 // pred_check
      _
    $region23: #{gru_forward.1} parent=1 // pred_check_branch
      %49 = sbr.rel (0) target = $region25
    $region24: #{gru_forward.1} parent=1 // pred_region
      %50 = dma.done [#allocation3], 128
    $region25: #{gru_forward.1} parent=1 // pred_fallthru
      _
    // Predicated region
    $region26: #{gru_forward.1} parent=1 // pred_check
      _
    $region27: #{gru_forward.1} parent=1 // pred_check_branch
      %52 = sbr.rel (0) target = $region29
    $region28: #{gru_forward.1} parent=1 // pred_region
      %53 = dma.done [#allocation5], 128
    $region29: #{gru_forward.1} parent=1 // pred_fallthru
      _
    // Predicated region
    $region30: #{gru_forward.1} parent=1 // pred_check
      _
    $region31: #{gru_forward.1} parent=1 // pred_check_branch
      %55 = sbr.rel (0) target = $region33
    $region32: #{gru_forward.1} parent=1 // pred_region
      %56 = dma.done [#allocation5], 2816
    $region33: #{gru_forward.1} parent=1 // pred_fallthru
      _
    %v57 = vld [vmem:[#allocation2] sm:$0xff]
    %v58 = vld [vmem:[#allocation4] sm:$0xff]
    %v59 = vld [vmem:[%s2] sm:$0x1]
    %v60 = vld [vmem:[#allocation6] sm:$0xff]
    %v61 = vld [vmem:[#allocation6 + $0x8] sm:$0xff]
    %v62 = vld [vmem:[#allocation6 + $0x10] sm:$0xff]
    %v63 = vld [vmem:[#allocation6 + $0x18] sm:$0xff]
    %v64 = vld [vmem:[#allocation6 + $0x20] sm:$0xff]
    %v65 = vld [vmem:[#allocation6 + $0x28] sm:$0xff]
    %v66 = vld [vmem:[#allocation6 + $0x50] sm:$0xff]
    %v67 = vld [vmem:[#allocation6 + $0x58] sm:$0xff]
    %v68 = vld [vmem:[#allocation6 + $0x60] sm:$0xff]
    %v69 = vld [vmem:[#allocation6 + $0x68] sm:$0xff]
    %vm70 = vcmask 261120
    %v72 = vsel %vm70, %v58, 0
    %74 = vmatprep.subr.mxu0 0.0
    %75 = vmatpush1.msra.mxu0 %v66
    %76 = vmatprep.subr.mxu0 0.0
    %77 = vmatpush1.msra.mxu0 %v67
    %78 = vmatprep.subr.mxu0 0.0
    %79 = vmatpush1.msra.mxu0 %v68
    %80 = vmatprep.subr.mxu0 0.0
    %81 = vmatpush1.msra.mxu0 %v69
    %82 = vmatprep.subr.mxu0 0.0
    %83 = vmatpush1.msra.mxu0 0.0
    %84 = vmatprep.subr.mxu0 0.0
    %85 = vmatpush1.msra.mxu0 0.0
    %86 = vmatprep.subr.mxu0 0.0
    %87 = vmatpush1.msra.mxu0 0.0
    %88 = vmatprep.subr.mxu0 0.0
    %89 = vmatpush1.msra.mxu0 0.0
    %90 = vmatprep.subr.mxu0 0.0
    %91 = vmatpush1.msra.mxu0 0.0
    %92 = vmatprep.subr.mxu0 0.0
    %93 = vmatpush1.msra.mxu0 0.0
    %94 = vmatprep.subr.mxu0 0.0
    %95 = vmatpush1.msra.mxu0 0.0
    %96 = vmatprep.subr.mxu0 0.0
    %97 = vmatpush1.msra.mxu0 0.0
    %98 = vmatprep.subr.mxu0 0.0
    %99 = vmatpush1.msra.mxu0 0.0
    %100 = vmatprep.subr.mxu0 0.0
    %101 = vmatpush1.msra.mxu0 0.0
    %102 = vmatprep.subr.mxu0 0.0
    %103 = vmatpush1.msra.mxu0 0.0
    %104 = vmatprep.subr.mxu0 0.0
    %105 = vmatpush1.msra.mxu0 0.0
    %106 = vmatprep.subr.mxu0 0.0
    %107 = vmatpush1.msra.mxu0 0.0
    %108 = vmatprep.subr.mxu0 0.0
    %109 = vmatpush1.msra.mxu0 0.0
    %110 = vmatprep.subr.mxu0 0.0
    %111 = vmatpush1.msra.mxu0 0.0
    %112 = vmatprep.subr.mxu0 0.0
    %113 = vmatpush1.msra.mxu0 0.0
    %114 = vmatprep.subr.mxu0 0.0
    %115 = vmatpush1.msra.mxu0 0.0
    %116 = vmatprep.subr.mxu0 0.0
    %117 = vmatpush1.msra.mxu0 0.0
    %118 = vmatprep.subr.mxu0 0.0
    %119 = vmatpush1.msra.mxu0 0.0
    %120 = vmatprep.subr.mxu0 0.0
    %121 = vmatpush1.msra.mxu0 0.0
    %122 = vmatprep.subr.mxu0 0.0
    %123 = vmatpush1.msra.mxu0 0.0
    %124 = vmatprep.subr.mxu0 0.0
    %125 = vmatpush1.msra.mxu0 0.0
    %126 = vmatprep.subr.mxu0 0.0
    %127 = vmatpush1.msra.mxu0 0.0
    %128 = vmatprep.subr.mxu0 0.0
    %129 = vmatpush1.msra.mxu0 0.0
    %130 = vmatprep.subr.mxu0 0.0
    %131 = vmatpush1.msra.mxu0 0.0
    %132 = vmatprep.subr.mxu0 0.0
    %133 = vmatpush1.msra.mxu0 0.0
    %134 = vmatprep.subr.mxu0 0.0
    %135 = vmatpush1.msra.mxu0 0.0
    %136 = vmatprep.subr.mxu0 0.0
    %137 = vmatpush1.msra.mxu0 0.0
    %138 = vmatprep.mubr.f32.mxu0 0.0
    %139 = vmatmul.mubr.f32.gmra.mrb[0].mxu0 %v72
    %v140 = vpop.f32.mrb[0].mxu0
    %v141 = vadd.f32 0.0, %v140
    %v142 = vpop.f32.mrb[0].mxu0
    %143 = vdwg.mxu0
    %vm144 = vcmask 392192
    %v146 = vsel %vm144, %v57, 0
    %148 = vmatprep.subr.mxu0 0.0
    %149 = vmatpush1.msra.mxu0 %v60
    %150 = vmatprep.subr.mxu0 0.0
    %151 = vmatpush1.msra.mxu0 %v61
    %152 = vmatprep.subr.mxu0 0.0
    %153 = vmatpush1.msra.mxu0 %v62
    %154 = vmatprep.subr.mxu0 0.0
    %155 = vmatpush1.msra.mxu0 %v63
    %156 = vmatprep.subr.mxu0 0.0
    %157 = vmatpush1.msra.mxu0 %v64
    %158 = vmatprep.subr.mxu0 0.0
    %159 = vmatpush1.msra.mxu0 %v65
    %160 = vmatprep.subr.mxu0 0.0
    %161 = vmatpush1.msra.mxu0 0.0
    %162 = vmatprep.subr.mxu0 0.0
    %163 = vmatpush1.msra.mxu0 0.0
    %164 = vmatprep.subr.mxu0 0.0
    %165 = vmatpush1.msra.mxu0 0.0
    %166 = vmatprep.subr.mxu0 0.0
    %167 = vmatpush1.msra.mxu0 0.0
    %168 = vmatprep.subr.mxu0 0.0
    %169 = vmatpush1.msra.mxu0 0.0
    %170 = vmatprep.subr.mxu0 0.0
    %171 = vmatpush1.msra.mxu0 0.0
    %172 = vmatprep.subr.mxu0 0.0
    %173 = vmatpush1.msra.mxu0 0.0
    %174 = vmatprep.subr.mxu0 0.0
    %175 = vmatpush1.msra.mxu0 0.0
    %176 = vmatprep.subr.mxu0 0.0
    %177 = vmatpush1.msra.mxu0 0.0
    %178 = vmatprep.subr.mxu0 0.0
    %179 = vmatpush1.msra.mxu0 0.0
    %180 = vmatprep.subr.mxu0 0.0
    %181 = vmatpush1.msra.mxu0 0.0
    %182 = vmatprep.subr.mxu0 0.0
    %183 = vmatpush1.msra.mxu0 0.0
    %184 = vmatprep.subr.mxu0 0.0
    %185 = vmatpush1.msra.mxu0 0.0
    %186 = vmatprep.subr.mxu0 0.0
    %187 = vmatpush1.msra.mxu0 0.0
    %188 = vmatprep.subr.mxu0 0.0
    %189 = vmatpush1.msra.mxu0 0.0
    %190 = vmatprep.subr.mxu0 0.0
    %191 = vmatpush1.msra.mxu0 0.0
    %192 = vmatprep.subr.mxu0 0.0
    %193 = vmatpush1.msra.mxu0 0.0
    %194 = vmatprep.subr.mxu0 0.0
    %195 = vmatpush1.msra.mxu0 0.0
    %196 = vmatprep.subr.mxu0 0.0
    %197 = vmatpush1.msra.mxu0 0.0
    %198 = vmatprep.subr.mxu0 0.0
    %199 = vmatpush1.msra.mxu0 0.0
    %200 = vmatprep.subr.mxu0 0.0
    %201 = vmatpush1.msra.mxu0 0.0
    %202 = vmatprep.subr.mxu0 0.0
    %203 = vmatpush1.msra.mxu0 0.0
    %204 = vmatprep.subr.mxu0 0.0
    %205 = vmatpush1.msra.mxu0 0.0
    %206 = vmatprep.subr.mxu0 0.0
    %207 = vmatpush1.msra.mxu0 0.0
    %208 = vmatprep.subr.mxu0 0.0
    %209 = vmatpush1.msra.mxu0 0.0
    %210 = vmatprep.subr.mxu0 0.0
    %211 = vmatpush1.msra.mxu0 0.0
    %212 = vmatprep.mubr.f32.mxu0 0.0
    %213 = vmatmul.mubr.f32.gmra.mrb[0].mxu0 %v146
    %v214 = vpop.f32.mrb[0].mxu0
    %v215 = vadd.f32 %v141, %v214
    %v216 = vpop.f32.mrb[0].mxu0
    %217 = vdwg.mxu0
    %v218 = vld [vmem:[#allocation6 + $0x30] sm:$0xff]
    %v219 = vld [vmem:[#allocation6 + $0x38] sm:$0xff]
    %v220 = vld [vmem:[#allocation6 + $0x40] sm:$0xff]
    %v221 = vld [vmem:[#allocation6 + $0x48] sm:$0xff]
    %v223 = vsel %vm70, %v59, 0
    %225 = vmatprep.subr.mxu0 0.0
    %226 = vmatpush1.msra.mxu0 %v218
    %227 = vmatprep.subr.mxu0 0.0
    %228 = vmatpush1.msra.mxu0 %v219
    %229 = vmatprep.subr.mxu0 0.0
    %230 = vmatpush1.msra.mxu0 %v220
    %231 = vmatprep.subr.mxu0 0.0
    %232 = vmatpush1.msra.mxu0 %v221
    %233 = vmatprep.subr.mxu0 0.0
    %234 = vmatpush1.msra.mxu0 0.0
    %235 = vmatprep.subr.mxu0 0.0
    %236 = vmatpush1.msra.mxu0 0.0
    %237 = vmatprep.subr.mxu0 0.0
    %238 = vmatpush1.msra.mxu0 0.0
    %239 = vmatprep.subr.mxu0 0.0
    %240 = vmatpush1.msra.mxu0 0.0
    %241 = vmatprep.subr.mxu0 0.0
    %242 = vmatpush1.msra.mxu0 0.0
    %243 = vmatprep.subr.mxu0 0.0
    %244 = vmatpush1.msra.mxu0 0.0
    %245 = vmatprep.subr.mxu0 0.0
    %246 = vmatpush1.msra.mxu0 0.0
    %247 = vmatprep.subr.mxu0 0.0
    %248 = vmatpush1.msra.mxu0 0.0
    %249 = vmatprep.subr.mxu0 0.0
    %250 = vmatpush1.msra.mxu0 0.0
    %251 = vmatprep.subr.mxu0 0.0
    %252 = vmatpush1.msra.mxu0 0.0
    %253 = vmatprep.subr.mxu0 0.0
    %254 = vmatpush1.msra.mxu0 0.0
    %255 = vmatprep.subr.mxu0 0.0
    %256 = vmatpush1.msra.mxu0 0.0
    %257 = vmatprep.subr.mxu0 0.0
    %258 = vmatpush1.msra.mxu0 0.0
    %259 = vmatprep.subr.mxu0 0.0
    %260 = vmatpush1.msra.mxu0 0.0
    %261 = vmatprep.subr.mxu0 0.0
    %262 = vmatpush1.msra.mxu0 0.0
    %263 = vmatprep.subr.mxu0 0.0
    %264 = vmatpush1.msra.mxu0 0.0
    %265 = vmatprep.subr.mxu0 0.0
    %266 = vmatpush1.msra.mxu0 0.0
    %267 = vmatprep.subr.mxu0 0.0
    %268 = vmatpush1.msra.mxu0 0.0
    %269 = vmatprep.subr.mxu0 0.0
    %270 = vmatpush1.msra.mxu0 0.0
    %271 = vmatprep.subr.mxu0 0.0
    %272 = vmatpush1.msra.mxu0 0.0
    %273 = vmatprep.subr.mxu0 0.0
    %274 = vmatpush1.msra.mxu0 0.0
    %275 = vmatprep.subr.mxu0 0.0
    %276 = vmatpush1.msra.mxu0 0.0
    %277 = vmatprep.subr.mxu0 0.0
    %278 = vmatpush1.msra.mxu0 0.0
    %279 = vmatprep.subr.mxu0 0.0
    %280 = vmatpush1.msra.mxu0 0.0
    %281 = vmatprep.subr.mxu0 0.0
    %282 = vmatpush1.msra.mxu0 0.0
    %283 = vmatprep.subr.mxu0 0.0
    %284 = vmatpush1.msra.mxu0 0.0
    %285 = vmatprep.subr.mxu0 0.0
    %286 = vmatpush1.msra.mxu0 0.0
    %287 = vmatprep.subr.mxu0 0.0
    %288 = vmatpush1.msra.mxu0 0.0
    %289 = vmatprep.mubr.f32.mxu0 0.0
    %290 = vmatmul.mubr.f32.gmra.mrb[0].mxu0 %v223
    %v291 = vpop.f32.mrb[0].mxu0
    %v292 = vadd.f32 0.0, %v291
    %v293 = vpop.f32.mrb[0].mxu0
    %294 = vdwg.mxu0
    %v295 = vlaneseq
    %v296 = vshrl.u32 %v295, 7
    %v297 = vsub.s32 0, %v296
    %v298 = vrot.slane %v292, %v297
    %v299 = vadd.f32 %v215, %v298
    %v300 = vld [vmem:[%s4] sm:$0x1]
    %v301 = vlaneseq
    %v302 = vshrl.u32 %v301, 7
    %v303 = vsub.s32 0, %v302
    %v304 = vrot.slane %v300, %v303
    %v305 = vadd.f32 %v299, %v304
    %v306 = vxor.u32 %v305, 2147483648
    %v307 = vmul.f32 %v306, 1.442695
    %v308 = vpow.pop %v307
    %v309 = vadd.f32 %v308, 1.0
    %v310 = vrcp.pop %v309
    %v311 = vmul.f32 1.0, %v310
    %313 = vrot.lane.b32.xlu0 %v305, 32
    %v314 = vpop.permute.xlu0 %313
    %v316 = vmul.f32 %v311, %v314
    %318 = vrot.lane.b32.xlu0 %v316, 64
    %v319 = vpop.permute.xlu0 %318
    %v321 = vadd.f32 %v305, %v319
    %v322 = vtanh.pop %v321
    %323 = vrot.lane.b32.xlu0 %v58, 32
    %v324 = vpop.permute.xlu0 %323
    %v326 = vmul.f32 %v311, %v324
    %v327 = vsub.f32 1.0, %v311
    %329 = vrot.lane.b32.xlu0 %v322, 96
    %v330 = vpop.permute.xlu0 %329
    %v332 = vmul.f32 %v327, %v330
    %v333 = vadd.f32 %v326, %v332
    %vm334 = vcmask 523520
    %v335 = vsel %vm334, %v333, 0.0
    %v336 = vrot.slane %v335, 4
    %v337 = vadd.f32 %v335, %v336
    %v338 = vrot.slane %v337, 2
    %v339 = vadd.f32 %v337, %v338
    %v340 = vrot.slane %v339, 1
    %v341 = vadd.f32 %v339, %v340
    %v342 = vmul.f32 %v341, 0.125
    %v343 = vld [vmem:[#allocation6 + $0x70] sm:$0xff]
    %v344 = vld [vmem:[#allocation6 + $0x78] sm:$0xff]
    %v345 = vld [vmem:[#allocation6 + $0x80] sm:$0xff]
    %v346 = vld [vmem:[#allocation6 + $0x88] sm:$0xff]
    %v347 = vld [vmem:[#allocation6 + $0x90] sm:$0xff]
    %v348 = vld [vmem:[#allocation6 + $0x98] sm:$0xff]
    %v349 = vld [vmem:[#allocation6 + $0xa0] sm:$0xff]
    %v350 = vld [vmem:[#allocation6 + $0xa8] sm:$0xff]
    %351 = vmatprep.subr.mxu0 0.0
    %352 = vmatpush1.msra.mxu0 %v347
    %353 = vmatprep.subr.mxu0 0.0
    %354 = vmatpush1.msra.mxu0 %v348
    %355 = vmatprep.subr.mxu0 0.0
    %356 = vmatpush1.msra.mxu0 %v349
    %357 = vmatprep.subr.mxu0 0.0
    %358 = vmatpush1.msra.mxu0 %v350
    %359 = vmatprep.subr.mxu0 0.0
    %360 = vmatpush1.msra.mxu0 0.0
    %361 = vmatprep.subr.mxu0 0.0
    %362 = vmatpush1.msra.mxu0 0.0
    %363 = vmatprep.subr.mxu0 0.0
    %364 = vmatpush1.msra.mxu0 0.0
    %365 = vmatprep.subr.mxu0 0.0
    %366 = vmatpush1.msra.mxu0 0.0
    %367 = vmatprep.subr.mxu0 0.0
    %368 = vmatpush1.msra.mxu0 0.0
    %369 = vmatprep.subr.mxu0 0.0
    %370 = vmatpush1.msra.mxu0 0.0
    %371 = vmatprep.subr.mxu0 0.0
    %372 = vmatpush1.msra.mxu0 0.0
    %373 = vmatprep.subr.mxu0 0.0
    %374 = vmatpush1.msra.mxu0 0.0
    %375 = vmatprep.subr.mxu0 0.0
    %376 = vmatpush1.msra.mxu0 0.0
    %377 = vmatprep.subr.mxu0 0.0
    %378 = vmatpush1.msra.mxu0 0.0
    %379 = vmatprep.subr.mxu0 0.0
    %380 = vmatpush1.msra.mxu0 0.0
    %381 = vmatprep.subr.mxu0 0.0
    %382 = vmatpush1.msra.mxu0 0.0
    %383 = vmatprep.subr.mxu0 0.0
    %384 = vmatpush1.msra.mxu0 0.0
    %385 = vmatprep.subr.mxu0 0.0
    %386 = vmatpush1.msra.mxu0 0.0
    %387 = vmatprep.subr.mxu0 0.0
    %388 = vmatpush1.msra.mxu0 0.0
    %389 = vmatprep.subr.mxu0 0.0
    %390 = vmatpush1.msra.mxu0 0.0
    %391 = vmatprep.subr.mxu0 0.0
    %392 = vmatpush1.msra.mxu0 0.0
    %393 = vmatprep.subr.mxu0 0.0
    %394 = vmatpush1.msra.mxu0 0.0
    %395 = vmatprep.subr.mxu0 0.0
    %396 = vmatpush1.msra.mxu0 0.0
    %397 = vmatprep.subr.mxu0 0.0
    %398 = vmatpush1.msra.mxu0 0.0
    %399 = vmatprep.subr.mxu0 0.0
    %400 = vmatpush1.msra.mxu0 0.0
    %401 = vmatprep.subr.mxu0 0.0
    %402 = vmatpush1.msra.mxu0 0.0
    %403 = vmatprep.subr.mxu0 0.0
    %404 = vmatpush1.msra.mxu0 0.0
    %405 = vmatprep.subr.mxu0 0.0
    %406 = vmatpush1.msra.mxu0 0.0
    %407 = vmatprep.subr.mxu0 0.0
    %408 = vmatpush1.msra.mxu0 0.0
    %409 = vmatprep.subr.mxu0 0.0
    %410 = vmatpush1.msra.mxu0 0.0
    %411 = vmatprep.subr.mxu0 0.0
    %412 = vmatpush1.msra.mxu0 0.0
    %413 = vmatprep.subr.mxu0 0.0
    %414 = vmatpush1.msra.mxu0 0.0
    %415 = vmatprep.mubr.f32.mxu0 0.0
    %416 = vmatmul.mubr.f32.gmra.mrb[0].mxu0 %v223
    %v417 = vpop.f32.mrb[0].mxu0
    %v418 = vadd.f32 0.0, %v417
    %v419 = vpop.f32.mrb[0].mxu0
    %420 = vdwg.mxu0
    %422 = vrot.lane.b32.xlu0 %v342, 96
    %v423 = vpop.permute.xlu0 %422
    %v424 = vsel %vm70, %v423, 0
    %426 = vmatprep.subr.mxu0 0.0
    %427 = vmatpush1.msra.mxu0 %v343
    %428 = vmatprep.subr.mxu0 0.0
    %429 = vmatpush1.msra.mxu0 %v344
    %430 = vmatprep.subr.mxu0 0.0
    %431 = vmatpush1.msra.mxu0 %v345
    %432 = vmatprep.subr.mxu0 0.0
    %433 = vmatpush1.msra.mxu0 %v346
    %434 = vmatprep.subr.mxu0 0.0
    %435 = vmatpush1.msra.mxu0 0.0
    %436 = vmatprep.subr.mxu0 0.0
    %437 = vmatpush1.msra.mxu0 0.0
    %438 = vmatprep.subr.mxu0 0.0
    %439 = vmatpush1.msra.mxu0 0.0
    %440 = vmatprep.subr.mxu0 0.0
    %441 = vmatpush1.msra.mxu0 0.0
    %442 = vmatprep.subr.mxu0 0.0
    %443 = vmatpush1.msra.mxu0 0.0
    %444 = vmatprep.subr.mxu0 0.0
    %445 = vmatpush1.msra.mxu0 0.0
    %446 = vmatprep.subr.mxu0 0.0
    %447 = vmatpush1.msra.mxu0 0.0
    %448 = vmatprep.subr.mxu0 0.0
    %449 = vmatpush1.msra.mxu0 0.0
    %450 = vmatprep.subr.mxu0 0.0
    %451 = vmatpush1.msra.mxu0 0.0
    %452 = vmatprep.subr.mxu0 0.0
    %453 = vmatpush1.msra.mxu0 0.0
    %454 = vmatprep.subr.mxu0 0.0
    %455 = vmatpush1.msra.mxu0 0.0
    %456 = vmatprep.subr.mxu0 0.0
    %457 = vmatpush1.msra.mxu0 0.0
    %458 = vmatprep.subr.mxu0 0.0
    %459 = vmatpush1.msra.mxu0 0.0
    %460 = vmatprep.subr.mxu0 0.0
    %461 = vmatpush1.msra.mxu0 0.0
    %462 = vmatprep.subr.mxu0 0.0
    %463 = vmatpush1.msra.mxu0 0.0
    %464 = vmatprep.subr.mxu0 0.0
    %465 = vmatpush1.msra.mxu0 0.0
    %466 = vmatprep.subr.mxu0 0.0
    %467 = vmatpush1.msra.mxu0 0.0
    %468 = vmatprep.subr.mxu0 0.0
    %469 = vmatpush1.msra.mxu0 0.0
    %470 = vmatprep.subr.mxu0 0.0
    %471 = vmatpush1.msra.mxu0 0.0
    %472 = vmatprep.subr.mxu0 0.0
    %473 = vmatpush1.msra.mxu0 0.0
    %474 = vmatprep.subr.mxu0 0.0
    %475 = vmatpush1.msra.mxu0 0.0
    %476 = vmatprep.subr.mxu0 0.0
    %477 = vmatpush1.msra.mxu0 0.0
    %478 = vmatprep.subr.mxu0 0.0
    %479 = vmatpush1.msra.mxu0 0.0
    %480 = vmatprep.subr.mxu0 0.0
    %481 = vmatpush1.msra.mxu0 0.0
    %482 = vmatprep.subr.mxu0 0.0
    %483 = vmatpush1.msra.mxu0 0.0
    %484 = vmatprep.subr.mxu0 0.0
    %485 = vmatpush1.msra.mxu0 0.0
    %486 = vmatprep.subr.mxu0 0.0
    %487 = vmatpush1.msra.mxu0 0.0
    %488 = vmatprep.subr.mxu0 0.0
    %489 = vmatpush1.msra.mxu0 0.0
    %490 = vmatprep.mubr.f32.mxu0 0.0
    %491 = vmatmul.mubr.f32.gmra.mrb[0].mxu0 %v424
    %v492 = vpop.f32.mrb[0].mxu0
    %v493 = vadd.f32 %v418, %v492
    %v494 = vpop.f32.mrb[0].mxu0
    %495 = vdwg.mxu0
    %v496 = vld [vmem:[%s4 + $0x1] sm:$0x1]
    %v497 = vadd.f32 %v493, %v496
    %v498 = vxor.u32 %v497, 2147483648
    %v499 = vmul.f32 %v498, 1.442695
    %v500 = vpow.pop %v499
    %v501 = vadd.f32 %v500, 1.0
    %v502 = vrcp.pop %v501
    %v503 = vmul.f32 1.0, %v502
    %505 = vrot.lane.b32.xlu0 %v497, 32
    %v506 = vpop.permute.xlu0 %505
    %v508 = vmul.f32 %v503, %v506
    %510 = vrot.lane.b32.xlu0 %v508, 64
    %v511 = vpop.permute.xlu0 %510
    %v513 = vadd.f32 %v497, %v511
    %v514 = vtanh.pop %v513
    %v515 = vlaneseq
    %v516 = vshrl.u32 %v515, 7
    %v517 = vsub.s32 0, %v516
    %v518 = vrot.slane %v59, %v517
    %519 = vrot.lane.b32.xlu0 %v518, 32
    %v520 = vpop.permute.xlu0 %519
    %v522 = vmul.f32 %v503, %v520
    %v523 = vsub.f32 1.0, %v503
    %525 = vrot.lane.b32.xlu0 %v514, 96
    %v526 = vpop.permute.xlu0 %525
    %v528 = vmul.f32 %v523, %v526
    %v529 = vadd.f32 %v522, %v528
    %531 = vrot.lane.b32.xlu0 %v333, 96
    %v532 = vpop.permute.xlu0 %531
    %534 = vst.msk [vmem:[%s5] sm:$0xff] %vm70, %v532
    %536 = vrot.lane.b32.xlu0 %v529, 96
    %v537 = vpop.permute.xlu0 %536
    %vm539 = vcmask 253952
    %540 = vst.msk [vmem:[%s5 + $0x8] sm:$0x1] %vm539, %v537
    // Predicated region
    $region34: #{gru_forward.1} parent=1 // pred_check
      _
    $region35: #{gru_forward.1} parent=1 // pred_check_branch
      %542 = sbr.rel (0) target = $region37
    $region36: #{gru_forward.1} parent=1 // pred_region
      _
    $region37: #{gru_forward.1} parent=1 // pred_fallthru
      _
    // Predicated region
    $region38: #{gru_forward.1} parent=1 // pred_check
      _
    $region39: #{gru_forward.1} parent=1 // pred_check_branch
      %544 = sbr.rel (0) target = $region41
    $region40: #{gru_forward.1} parent=1 // pred_region
      _
    $region41: #{gru_forward.1} parent=1 // pred_fallthru
      _
    %545 = vsyncpa [#allocation3], 1
    %546 = vsyncpa [#allocation5], 1

</llo_original>
